<compile_context>
chip_gen: v7x
topology: tpu7x:2x2x1
jax: 0.10.0
libtpu: 0.0.40
codegen_flags: <defaults>
</compile_context>

<pallas_src>
import jax
import jax.numpy as jnp
from jax.experimental import pallas as pl
from jax.experimental.pallas import tpu as pltpu

EPS = 1e-5


def tunnel_kernel(x_ref, w1_ref, vecs_ref, seg_ref, w2_ref, o_ref):
    # Small per-feature vectors, hoisted above the matmuls.
    vecs = vecs_ref[...]                               # (4, Wh): [b1; ln_w; ln_b; b2(pad)]
    b1 = vecs[0:1, :]
    lnw = vecs[1:2, :]
    lnb = vecs[2:3, :]
    b2 = vecs[3:4, : o_ref.shape[-1]]

    x = x_ref[...]                                     # (TP, 128) f32, lane-dense

    # --- linear 1 (block-diagonal, MXU) + bias ---
    h = jnp.dot(x, w1_ref[...], preferred_element_type=jnp.float32) + b1   # (TP, Wh)

    # --- segmented LayerNorm over each 64-lane group (matches per-row LN exactly) ---
    # seg is block-diagonal with 1/h inside each segment: h @ seg broadcasts the segment
    # mean back to every lane of that segment (one MXU op, no XLU reduction).
    seg = seg_ref[...]                                 # (Wh, Wh)
    mean = jnp.dot(h, seg, preferred_element_type=jnp.float32)
    centered = h - mean                                # materialized once, reused
    var = jnp.dot(centered * centered, seg, preferred_element_type=jnp.float32)
    hn = centered * jax.lax.rsqrt(var + EPS)           # biased var + eps: matches torch
    hn = hn * lnw + lnb

    # --- function: relu ---
    hn = jnp.maximum(hn, 0.0)

    # --- affine folded into linear 2 (block-diagonal, MXU) ---
    o = jnp.dot(hn, w2_ref[...], preferred_element_type=jnp.float32) + b2  # (TP, 128)
    o_ref[...] = o.astype(o_ref.dtype)


def _round_up(x, n):
    return ((x + n - 1) // n) * n


def _block_diag(w, reps):
    a, b = w.shape
    out = jnp.zeros((reps * a, reps * b), w.dtype)
    for j in range(reps):
        out = out.at[j * a:(j + 1) * a, j * b:(j + 1) * b].set(w)
    return out


def tunnel_forward(x, params, *, tile_rows=2048, min_grid=2,
                   vmem_limit_bytes=48 * 1024 * 1024):
    """x: (batch, seq, d_in) float32. Returns (batch, seq, d_out).

    tile_rows / min_grid are in *packed* rows (one packed row = 128//d_in original rows).
    """
    bsz, seq, d_in = x.shape
    w1, b1, lnw, lnb, affw, affb, w2, b2 = params
    hid = w1.shape[1]
    d_out = w2.shape[1]

    # Lane packing factor: pack `pack` original rows into one 128-lane row.
    pack = 128 // d_in if (d_in < 128 and 128 % d_in == 0) else 1
    w_in, w_h, w_out = pack * d_in, pack * hid, pack * d_out

    # Fold the per-feature affine into the second linear (exact in real arithmetic).
    w2f = affw.reshape(-1, 1) * w2                     # (hid, d_out)
    b2f = affb @ w2 + b2                               # (1, d_out)

    # Block-diagonal packed weights + segment-averaging matrix for the segmented LN.
    w1b = _block_diag(w1, pack)                        # (w_in, w_h)
    w2b = _block_diag(w2f, pack)                       # (w_h, w_out)
    seg = _block_diag(jnp.full((hid, hid), 1.0 / hid, jnp.float32), pack)  # (w_h, w_h)

    # Pack all small per-feature vectors into one (4, w_h) input.
    b2t = jnp.pad(jnp.tile(b2f, (1, pack)), ((0, 0), (0, w_h - w_out)))
    vecs = jnp.concatenate(
        [jnp.tile(b1, (1, pack)), jnp.tile(lnw, (1, pack)),
         jnp.tile(lnb, (1, pack)), b2t], axis=0)       # (4, w_h)

    # --- choose packed-row tiling -------------------------------------------------
    m = bsz * seq
    mp = pl.cdiv(m, pack)                              # packed rows needed
    mp8 = max(8, _round_up(mp, 8))                     # sublane quantum

    # Clamp the tile so double-buffered I/O + ~5 (tp, w_h) f32 LN temporaries fit VMEM
    # (important on v7x, whose physical VMEM is 64 MiB).
    row_bytes = 4 * (2 * w_in + 2 * w_out + 5 * w_h)
    vmem_budget = int(vmem_limit_bytes * 0.75)
    tile_cap = max(8, min(_round_up(tile_rows, 8), (vmem_budget // row_bytes) // 8 * 8))

    # Grid steps: enough to respect the tile cap, at least min_grid (megacore sharding on
    # v7x) when there is enough work; then size the tile so the split is balanced and
    # padding waste is < 8 packed rows per step.
    g = max(pl.cdiv(mp8, tile_cap), min_grid)
    g = max(1, min(g, mp8 // 8))
    tp = _round_up(pl.cdiv(mp8, g), 8)
    mp_pad = g * tp
    m_pad = mp_pad * pack

    # Pad rows (zeros are numerically safe through the segmented LN: each original row
    # owns its own lane segment, and eps > 0 keeps rsqrt finite) and lane-pack.
    x2d = x.reshape(m, d_in)
    if m_pad != m:
        x2d = jnp.pad(x2d, ((0, m_pad - m), (0, 0)))
    xp = x2d.reshape(mp_pad, w_in)

    row_spec_in = pl.BlockSpec((tp, w_in), lambda i: (i, 0))
    row_spec_out = pl.BlockSpec((tp, w_out), lambda i: (i, 0))
    full = lambda shape: pl.BlockSpec(shape, lambda i: (0, 0))

    outp = pl.pallas_call(
        tunnel_kernel,
        out_shape=jax.ShapeDtypeStruct((mp_pad, w_out), x.dtype),
        grid_spec=pltpu.PrefetchScalarGridSpec(
            num_scalar_prefetch=0,
            grid=(g,),
            in_specs=[
                row_spec_in,                 # x, lane-packed (tp, 128)
                full((w_in, w_h)),           # block-diagonal W1
                full((4, w_h)),              # packed [b1; ln_w; ln_b; b2]
                full((w_h, w_h)),            # segment-averaging matrix
                full((w_h, w_out)),          # block-diagonal W2 (affine folded in)
            ],
            out_specs=row_spec_out,
        ),
        compiler_params=pltpu.CompilerParams(
            dimension_semantics=("parallel",),
            vmem_limit_bytes=vmem_limit_bytes,
        ),
    )(xp, w1b, vecs, seg, w2b)

    return outp.reshape(m_pad, d_out)[:m].reshape(bsz, seq, d_out)


def reference_forward(x, params):
    w1, b1, lnw, lnb, affw, affb, w2, b2 = params
    h = x @ w1 + b1
    mean = h.mean(-1, keepdims=True)
    var = ((h - mean) ** 2).mean(-1, keepdims=True)
    h = (h - mean) / jnp.sqrt(var + EPS) * lnw + lnb
    h = jnp.maximum(h, 0.0)
    h = h * affw + affb
    return h @ w2 + b2


def make_params(d_in=32, hidden=64, d_out=32):
    key = jax.random.PRNGKey(0)
    k1, k2, k3, k4 = jax.random.split(key, 4)
    w1 = jax.random.normal(k1, (d_in, hidden), jnp.float32) * (1.0 / jnp.sqrt(d_in))
    b1 = jax.random.normal(k2, (1, hidden), jnp.float32) * 0.02
    lnw = jnp.ones((1, hidden), jnp.float32)          # LayerNorm weight init -> 1
    lnb = jnp.zeros((1, hidden), jnp.float32)         # LayerNorm bias init -> 0
    affw = jnp.full((1, hidden), 0.5, jnp.float32)    # Affine(weight=0.5, bias=0.1)
    affb = jnp.full((1, hidden), 0.1, jnp.float32)
    w2 = jax.random.normal(k3, (hidden, d_out), jnp.float32) * (1.0 / jnp.sqrt(hidden))
    b2 = jax.random.normal(k4, (1, d_out), jnp.float32) * 0.02
    return (w1, b1, lnw, lnb, affw, affb, w2, b2)


if __name__ == "__main__":
    batch, seq, d_in, hidden, d_out = 2, 8, 32, 64, 32
    params = make_params(d_in, hidden, d_out)
    x = jax.random.normal(jax.random.PRNGKey(42), (batch, seq, d_in), jnp.float32)

    out = tunnel_forward(x, params)
    out = jax.block_until_ready(out)

    ref = reference_forward(x.reshape(-1, d_in), params).reshape(batch, seq, d_out)
    assert out.shape == (batch, seq, d_out)
    assert jnp.allclose(out, ref, atol=1e-4, rtol=1e-4), "mismatch vs pure-JAX reference"

    # Also exercise the tiled / remainder / multi-step path with a larger, non-aligned
    # row count (m = 2400 original rows -> 600 packed rows -> 2 balanced grid steps).
    batch2, seq2 = 4, 600
    x_big = jax.random.normal(jax.random.PRNGKey(7), (batch2, seq2, d_in), jnp.float32)
    out_big = jax.block_until_ready(tunnel_forward(x_big, params, tile_rows=2048))
    ref_big = reference_forward(x_big.reshape(-1, d_in), params).reshape(batch2, seq2, d_out)
    assert jnp.allclose(out_big, ref_big, atol=1e-4, rtol=1e-4), "mismatch on tiled path"

    # TODO(synk): 'dropout', 'batchnorm'/'bsbn' (running stats, train-mode) and dynamic
    # 'view'/'slice'/'squeeze' tunnel layer types are shape plumbing or stateful ops and
    # are not fused in-kernel.
    print("KERNEL_OK")
</pallas_src>

<mosaic_0001>
module attributes {stable_mosaic.version = 11 : i64} {
  func.func @tunnel_kernel(%arg0: i32, %arg1: memref<8x128xf32, #tpu.memory_space<vmem>>, %arg2: memref<128x256xf32, #tpu.memory_space<vmem>>, %arg3: memref<4x256xf32, #tpu.memory_space<vmem>>, %arg4: memref<256x256xf32, #tpu.memory_space<vmem>>, %arg5: memref<256x128xf32, #tpu.memory_space<vmem>>, %arg6: memref<8x128xf32, #tpu.memory_space<vmem>>) attributes {dimension_semantics = [#tpu.dimension_semantics<parallel>], iteration_bounds = array<i64: 1>, scalar_prefetch = 0 : i64, scratch_operands = 0 : i64, tpu.core_type = #tpu.core_type<tc>, window_params = [{transform_indices = @transform_0, window_bounds = array<i64: 8, 128>}, {pipeline_mode = #tpu.pipeline_mode<synchronous>, transform_indices = @transform_1, window_bounds = array<i64: 128, 256>}, {pipeline_mode = #tpu.pipeline_mode<synchronous>, transform_indices = @transform_2, window_bounds = array<i64: 4, 256>}, {pipeline_mode = #tpu.pipeline_mode<synchronous>, transform_indices = @transform_3, window_bounds = array<i64: 256, 256>}, {pipeline_mode = #tpu.pipeline_mode<synchronous>, transform_indices = @transform_4, window_bounds = array<i64: 256, 128>}, {transform_indices = @transform_5, window_bounds = array<i64: 8, 128>}]} {
    %c0 = arith.constant 0 : index
    %c0_0 = arith.constant 0 : index
    %0 = vector.load %arg3[%c0, %c0_0] : memref<4x256xf32, #tpu.memory_space<vmem>>, vector<4x256xf32>
    %1 = vector.extract_strided_slice %0 {offsets = [0, 0], sizes = [1, 256], strides = [1, 1]} : vector<4x256xf32> to vector<1x256xf32>
    %2 = vector.extract_strided_slice %0 {offsets = [1, 0], sizes = [1, 256], strides = [1, 1]} : vector<4x256xf32> to vector<1x256xf32>
    %3 = vector.extract_strided_slice %0 {offsets = [2, 0], sizes = [1, 256], strides = [1, 1]} : vector<4x256xf32> to vector<1x256xf32>
    %4 = vector.extract_strided_slice %0 {offsets = [3, 0], sizes = [1, 128], strides = [1, 1]} : vector<4x256xf32> to vector<1x128xf32>
    %c0_1 = arith.constant 0 : index
    %c0_2 = arith.constant 0 : index
    %5 = vector.load %arg1[%c0_1, %c0_2] : memref<8x128xf32, #tpu.memory_space<vmem>>, vector<8x128xf32>
    %c0_3 = arith.constant 0 : index
    %c0_4 = arith.constant 0 : index
    %6 = vector.load %arg2[%c0_3, %c0_4] : memref<128x256xf32, #tpu.memory_space<vmem>>, vector<128x256xf32>
    %cst = arith.constant dense<0.000000e+00> : vector<8x256xf32>
    %7 = tpu.matmul %5, %6, %cst {dimension_numbers = #tpu.dot_dimension_numbers<[1], [0], [0], [1], [0, 0, 1, 1], [], []>} : vector<8x128xf32>, vector<128x256xf32>, vector<8x256xf32> -> vector<8x256xf32>
    %8 = vector.broadcast %1 : vector<1x256xf32> to vector<8x256xf32>
    %9 = arith.addf %7, %8 : vector<8x256xf32>
    %c0_5 = arith.constant 0 : index
    %c0_6 = arith.constant 0 : index
    %10 = vector.load %arg4[%c0_5, %c0_6] : memref<256x256xf32, #tpu.memory_space<vmem>>, vector<256x256xf32>
    %cst_7 = arith.constant dense<0.000000e+00> : vector<8x256xf32>
    %11 = tpu.matmul %9, %10, %cst_7 {dimension_numbers = #tpu.dot_dimension_numbers<[1], [0], [0], [1], [0, 0, 1, 1], [], []>} : vector<8x256xf32>, vector<256x256xf32>, vector<8x256xf32> -> vector<8x256xf32>
    %12 = arith.subf %9, %11 : vector<8x256xf32>
    %13 = arith.mulf %12, %12 : vector<8x256xf32>
    %cst_8 = arith.constant dense<0.000000e+00> : vector<8x256xf32>
    %14 = tpu.matmul %13, %10, %cst_8 {dimension_numbers = #tpu.dot_dimension_numbers<[1], [0], [0], [1], [0, 0, 1, 1], [], []>} : vector<8x256xf32>, vector<256x256xf32>, vector<8x256xf32> -> vector<8x256xf32>
    %cst_9 = arith.constant 9.99999974E-6 : f32
    %15 = vector.broadcast %cst_9 : f32 to vector<8x256xf32>
    %16 = arith.addf %14, %15 : vector<8x256xf32>
    %17 = math.rsqrt %16 : vector<8x256xf32>
    %18 = arith.mulf %12, %17 : vector<8x256xf32>
    %19 = vector.broadcast %2 : vector<1x256xf32> to vector<8x256xf32>
    %20 = arith.mulf %18, %19 : vector<8x256xf32>
    %21 = vector.broadcast %3 : vector<1x256xf32> to vector<8x256xf32>
    %22 = arith.addf %20, %21 : vector<8x256xf32>
    %cst_10 = arith.constant 0.000000e+00 : f32
    %23 = vector.broadcast %cst_10 : f32 to vector<8x256xf32>
    %24 = arith.maximumf %22, %23 : vector<8x256xf32>
    %c0_11 = arith.constant 0 : index
    %c0_12 = arith.constant 0 : index
    %25 = vector.load %arg5[%c0_11, %c0_12] : memref<256x128xf32, #tpu.memory_space<vmem>>, vector<256x128xf32>
    %cst_13 = arith.constant dense<0.000000e+00> : vector<8x128xf32>
    %26 = tpu.matmul %24, %25, %cst_13 {dimension_numbers = #tpu.dot_dimension_numbers<[1], [0], [0], [1], [0, 0, 1, 1], [], []>} : vector<8x256xf32>, vector<256x128xf32>, vector<8x128xf32> -> vector<8x128xf32>
    %27 = vector.broadcast %4 : vector<1x128xf32> to vector<8x128xf32>
    %28 = arith.addf %26, %27 : vector<8x128xf32>
    %c0_14 = arith.constant 0 : index
    %c0_15 = arith.constant 0 : index
    %29 = vector.load %arg6[%c0_14, %c0_15] : memref<8x128xf32, #tpu.memory_space<vmem>>, vector<8x128xf32>
    tpu.vector_store %arg6[%c0_14, %c0_15], %28 {strides = array<i32>} : memref<8x128xf32, #tpu.memory_space<vmem>>, vector<8x128xf32>,
    return
  }
  func.func @transform_0(%arg0: i32) -> (i32, i32) {
    %c0_i32 = arith.constant 0 : i32
    %c0_i32_0 = arith.constant 0 : i32
    return %arg0, %c0_i32 : i32, i32
  }
  func.func @transform_1(%arg0: i32) -> (i32, i32) {
    %c0_i32 = arith.constant 0 : i32
    %c0_i32_0 = arith.constant 0 : i32
    %c0_i32_1 = arith.constant 0 : i32
    return %c0_i32, %c0_i32_0 : i32, i32
  }
  func.func @transform_2(%arg0: i32) -> (i32, i32) {
    %c0_i32 = arith.constant 0 : i32
    %c0_i32_0 = arith.constant 0 : i32
    %c0_i32_1 = arith.constant 0 : i32
    return %c0_i32, %c0_i32_0 : i32, i32
  }
  func.func @transform_3(%arg0: i32) -> (i32, i32) {
    %c0_i32 = arith.constant 0 : i32
    %c0_i32_0 = arith.constant 0 : i32
    %c0_i32_1 = arith.constant 0 : i32
    return %c0_i32, %c0_i32_0 : i32, i32
  }
  func.func @transform_4(%arg0: i32) -> (i32, i32) {
    %c0_i32 = arith.constant 0 : i32
    %c0_i32_0 = arith.constant 0 : i32
    %c0_i32_1 = arith.constant 0 : i32
    return %c0_i32, %c0_i32_0 : i32, i32
  }
  func.func @transform_5(%arg0: i32) -> (i32, i32) {
    %c0_i32 = arith.constant 0 : i32
    %c0_i32_0 = arith.constant 0 : i32
    return %arg0, %c0_i32 : i32, i32
  }
}

</mosaic_0001>

<llo_original>
// kernel: tpu_custom_call.1
$region0: #{tpu_custom_call.1}
  #allocation0 [shape = 'u32[]', space=smem, size = 0x4, offset = 0x4, fixed_abs, tag = 'smem constant byte address 0x4 - core index']
  #allocation1 [shape = 'u32[144,128]{1,0:T(1,128)}', space=vmem, size = 0x12000, scoped, tag = 'internal scratch']
  %s0 = inlined_call_operand.hbm [shape: f32[8,128], index: 0, kind: input, shape index: {}]
  %s1 = inlined_call_operand.hbm [shape: f32[128,256], index: 1, kind: input, shape index: {}]
  %s2 = inlined_call_operand.hbm [shape: f32[4,256], index: 2, kind: input, shape index: {}]
  %s3 = inlined_call_operand.hbm [shape: f32[256,256], index: 3, kind: input, shape index: {}]
  %s4 = inlined_call_operand.hbm [shape: f32[256,128], index: 4, kind: input, shape index: {}]
  %s5 = inlined_call_operand.hbm [shape: f32[8,128], index: 5, kind: output, shape index: {}]
  %s6 = sld [smem:[#allocation0]]
  $region50: #{tpu_custom_call.1} parent=0
    _
  %s8 = ssub.s32 1, %s6
  %s9 = scalar_select 0, %s8, %s6
  $region1: #{tpu_custom_call.1} parent=0
    #allocation2 [shape = 'u8[4096]{0}', space=vmem, size = 0x1000, scoped, tag = 'input window, operand 0, single buffered']
    #allocation3 [shape = 's32[1]{0}', space=sflag, size = 0x4, scoped, tag = 'scoped memory for tpu_custom_call.1']
    #allocation4 [shape = 's32[1]{0}', space=sflag, size = 0x4, scoped, tag = 'scoped memory for tpu_custom_call.1']
    #allocation5 [shape = 'u8[131072]{0}', space=vmem, size = 0x20000, scoped, tag = 'input window, operand 1, single buffered']
    #allocation6 [shape = 's32[1]{0}', space=sflag, size = 0x4, scoped, tag = 'scoped memory for tpu_custom_call.1']
    #allocation7 [shape = 'u8[4096]{0}', space=vmem, size = 0x1000, scoped, tag = 'input window, operand 2, single buffered']
    #allocation8 [shape = 'u8[262144]{0}', space=vmem, size = 0x40000, scoped, tag = 'input window, operand 3, single buffered']
    #allocation9 [shape = 's32[1]{0}', space=sflag, size = 0x4, scoped, tag = 'scoped memory for tpu_custom_call.1']
    #allocation10 [shape = 'u8[131072]{0}', space=vmem, size = 0x20000, scoped, tag = 'input window, operand 4, single buffered']
    #allocation11 [shape = 'u8[4096]{0}', space=vmem, size = 0x1000, scoped, tag = 'output window, operand 0, single buffered']
    %10 = vsyncpa [#allocation3], 0
    %11 = vsyncpa [#allocation6], 0
    %12 = vsyncpa [#allocation9], 0
    %13 = vsyncpa [#allocation4], 0
    // Predicated region
    $region2: #{tpu_custom_call.1} parent=1 // pred_check
      _
    $region3: #{tpu_custom_call.1} parent=1 // pred_check_branch
      %15 = sbr.rel (0) target = $region5
    $region4: #{tpu_custom_call.1} parent=1 // pred_region
      %s17 = ssub.s32 128, 128
      %18 = vsyncadd [#allocation3], %s17
      %s20 = sshll.u32 [#allocation2], 4
      %s21 = int_to_ptr.vmem [resolvable:$true] %s20
      %23 = dma.hbm_to_vmem [thread:$0]  %s0, 128, %s21, [#allocation3]
    $region5: #{tpu_custom_call.1} parent=1 // pred_fallthru
      _
    // Predicated region
    $region6: #{tpu_custom_call.1} parent=1 // pred_check
      _
    $region7: #{tpu_custom_call.1} parent=1 // pred_check_branch
      %25 = sbr.rel (0) target = $region9
    $region8: #{tpu_custom_call.1} parent=1 // pred_region
      %s27 = ssub.s32 4096, 4096
      %28 = vsyncadd [#allocation6], %s27
      %s29 = sshll.u32 [#allocation5], 4
      %s30 = int_to_ptr.vmem [resolvable:$true] %s29
      %35 = dma.hbm_to_vmem [thread:$0]  %s1, 4096, %s30, [#allocation6], 256, 256, 16
    $region9: #{tpu_custom_call.1} parent=1 // pred_fallthru
      _
    // Predicated region
    $region10: #{tpu_custom_call.1} parent=1 // pred_check
      _
    $region11: #{tpu_custom_call.1} parent=1 // pred_check_branch
      %37 = sbr.rel (0) target = $region13
    $region12: #{tpu_custom_call.1} parent=1 // pred_region
      %s39 = ssub.s32 128, 128
      %40 = vsyncadd [#allocation6], %s39
      %s42 = sshll.u32 [#allocation7], 4
      %s43 = int_to_ptr.vmem [resolvable:$true] %s42
      %45 = dma.hbm_to_vmem [thread:$0]  %s2, 128, %s43, [#allocation6]
    $region13: #{tpu_custom_call.1} parent=1 // pred_fallthru
      _
    // Predicated region
    $region14: #{tpu_custom_call.1} parent=1 // pred_check
      _
    $region15: #{tpu_custom_call.1} parent=1 // pred_check_branch
      %47 = sbr.rel (0) target = $region17
    $region16: #{tpu_custom_call.1} parent=1 // pred_region
      %s49 = ssub.s32 8192, 8192
      %50 = vsyncadd [#allocation9], %s49
      %s51 = sshll.u32 [#allocation8], 4
      %s52 = int_to_ptr.vmem [resolvable:$true] %s51
      %57 = dma.hbm_to_vmem [thread:$0]  %s3, 8192, %s52, [#allocation9], 256, 256, 16
    $region17: #{tpu_custom_call.1} parent=1 // pred_fallthru
      _
    // Predicated region
    $region18: #{tpu_custom_call.1} parent=1 // pred_check
      _
    $region19: #{tpu_custom_call.1} parent=1 // pred_check_branch
      %59 = sbr.rel (0) target = $region21
    $region20: #{tpu_custom_call.1} parent=1 // pred_region
      %s61 = ssub.s32 4096, 4096
      %62 = vsyncadd [#allocation9], %s61
      %s63 = sshll.u32 [#allocation10], 4
      %s64 = int_to_ptr.vmem [resolvable:$true] %s63
      %69 = dma.hbm_to_vmem [thread:$0]  %s4, 4096, %s64, [#allocation9], 128, 128, 8
    $region21: #{tpu_custom_call.1} parent=1 // pred_fallthru
      _
    // Predicated region
    $region22: #{tpu_custom_call.1} parent=1 // pred_check
      _
    $region23: #{tpu_custom_call.1} parent=1 // pred_check_branch
      %71 = sbr.rel (0) target = $region25
    $region24: #{tpu_custom_call.1} parent=1 // pred_region
      %72 = dma.done [#allocation3], 128
    $region25: #{tpu_custom_call.1} parent=1 // pred_fallthru
      _
    // Predicated region
    $region26: #{tpu_custom_call.1} parent=1 // pred_check
      _
    $region27: #{tpu_custom_call.1} parent=1 // pred_check_branch
      %74 = sbr.rel (0) target = $region29
    $region28: #{tpu_custom_call.1} parent=1 // pred_region
      %75 = dma.done [#allocation6], 4096
    $region29: #{tpu_custom_call.1} parent=1 // pred_fallthru
      _
    // Predicated region
    $region30: #{tpu_custom_call.1} parent=1 // pred_check
      _
    $region31: #{tpu_custom_call.1} parent=1 // pred_check_branch
      %77 = sbr.rel (0) target = $region33
    $region32: #{tpu_custom_call.1} parent=1 // pred_region
      %78 = dma.done [#allocation6], 128
    $region33: #{tpu_custom_call.1} parent=1 // pred_fallthru
      _
    // Predicated region
    $region34: #{tpu_custom_call.1} parent=1 // pred_check
      _
    $region35: #{tpu_custom_call.1} parent=1 // pred_check_branch
      %80 = sbr.rel (0) target = $region37
    $region36: #{tpu_custom_call.1} parent=1 // pred_region
      %81 = dma.done [#allocation9], 8192
    $region37: #{tpu_custom_call.1} parent=1 // pred_fallthru
      _
    // Predicated region
    $region38: #{tpu_custom_call.1} parent=1 // pred_check
      _
    $region39: #{tpu_custom_call.1} parent=1 // pred_check_branch
      %83 = sbr.rel (0) target = $region41
    $region40: #{tpu_custom_call.1} parent=1 // pred_region
      %84 = dma.done [#allocation9], 4096
    $region41: #{tpu_custom_call.1} parent=1 // pred_fallthru
      _
    %v85 = vld [vmem:[#allocation7] sm:$0xff]
    %v86 = vld [vmem:[#allocation2] sm:$0xff]
    %v87 = vld [vmem:[#allocation5] sm:$0xff]
    %v88 = vld [vmem:[#allocation5 + $0x8] sm:$0xff]
    %v89 = vld [vmem:[#allocation5 + $0x10] sm:$0xff]
    %v90 = vld [vmem:[#allocation5 + $0x18] sm:$0xff]
    %v91 = vld [vmem:[#allocation5 + $0x20] sm:$0xff]
    %v92 = vld [vmem:[#allocation5 + $0x28] sm:$0xff]
    %v93 = vld [vmem:[#allocation5 + $0x30] sm:$0xff]
    %v94 = vld [vmem:[#allocation5 + $0x38] sm:$0xff]
    %v95 = vld [vmem:[#allocation5 + $0x40] sm:$0xff]
    %v96 = vld [vmem:[#allocation5 + $0x48] sm:$0xff]
    %v97 = vld [vmem:[#allocation5 + $0x50] sm:$0xff]
    %v98 = vld [vmem:[#allocation5 + $0x58] sm:$0xff]
    %v99 = vld [vmem:[#allocation5 + $0x60] sm:$0xff]
    %v100 = vld [vmem:[#allocation5 + $0x68] sm:$0xff]
    %v101 = vld [vmem:[#allocation5 + $0x70] sm:$0xff]
    %v102 = vld [vmem:[#allocation5 + $0x78] sm:$0xff]
    %v103 = vld [vmem:[#allocation5 + $0x80] sm:$0xff]
    %v104 = vld [vmem:[#allocation5 + $0x88] sm:$0xff]
    %v105 = vld [vmem:[#allocation5 + $0x90] sm:$0xff]
    %v106 = vld [vmem:[#allocation5 + $0x98] sm:$0xff]
    %v107 = vld [vmem:[#allocation5 + $0xa0] sm:$0xff]
    %v108 = vld [vmem:[#allocation5 + $0xa8] sm:$0xff]
    %v109 = vld [vmem:[#allocation5 + $0xb0] sm:$0xff]
    %v110 = vld [vmem:[#allocation5 + $0xb8] sm:$0xff]
    %v111 = vld [vmem:[#allocation5 + $0xc0] sm:$0xff]
    %v112 = vld [vmem:[#allocation5 + $0xc8] sm:$0xff]
    %v113 = vld [vmem:[#allocation5 + $0xd0] sm:$0xff]
    %v114 = vld [vmem:[#allocation5 + $0xd8] sm:$0xff]
    %v115 = vld [vmem:[#allocation5 + $0xe0] sm:$0xff]
    %v116 = vld [vmem:[#allocation5 + $0xe8] sm:$0xff]
    %v117 = vld [vmem:[#allocation5 + $0xf0] sm:$0xff]
    %v118 = vld [vmem:[#allocation5 + $0xf8] sm:$0xff]
    %v120 = vlaneseq
    %v121 = vshrl.u32 %v120, 7
    %v122 = vsub.s32 0, %v121
    %v123 = vrot.slane %v85, %v122
    %v124 = vlaneseq
    %v125 = vshrl.u32 %v124, 7
    %v126 = vsub.s32 4, %v125
    %v127 = vrot.slane %v85, %v126
    %v130 = vlaneseq
    %v131 = vshrl.u32 %v130, 7
    %v132 = vsub.s32 0, %v131
    %v133 = vrot.slane %v123, %v132
    %v134 = vlaneseq
    %v135 = vshrl.u32 %v134, 7
    %v136 = vsub.s32 0, %v135
    %v137 = vrot.slane %v127, %v136
    %138 = vmatprep.subr.mxu0 %v88
    %139 = vmatpush1.msra.mxu0 %v87
    %140 = vmatprep.subr.mxu0 %v90
    %141 = vmatpush1.msra.mxu0 %v89
    %142 = vmatprep.subr.mxu0 %v92
    %143 = vmatpush1.msra.mxu0 %v91
    %144 = vmatprep.subr.mxu0 %v94
    %145 = vmatpush1.msra.mxu0 %v93
    %146 = vmatprep.subr.mxu0 %v96
    %147 = vmatpush1.msra.mxu0 %v95
    %148 = vmatprep.subr.mxu0 %v98
    %149 = vmatpush1.msra.mxu0 %v97
    %150 = vmatprep.subr.mxu0 %v100
    %151 = vmatpush1.msra.mxu0 %v99
    %152 = vmatprep.subr.mxu0 %v102
    %153 = vmatpush1.msra.mxu0 %v101
    %154 = vmatprep.subr.mxu0 %v104
    %155 = vmatpush1.msra.mxu0 %v103
    %156 = vmatprep.subr.mxu0 %v106
    %157 = vmatpush1.msra.mxu0 %v105
    %158 = vmatprep.subr.mxu0 %v108
    %159 = vmatpush1.msra.mxu0 %v107
    %160 = vmatprep.subr.mxu0 %v110
    %161 = vmatpush1.msra.mxu0 %v109
    %162 = vmatprep.subr.mxu0 %v112
    %163 = vmatpush1.msra.mxu0 %v111
    %164 = vmatprep.subr.mxu0 %v114
    %165 = vmatpush1.msra.mxu0 %v113
    %166 = vmatprep.subr.mxu0 %v116
    %167 = vmatpush1.msra.mxu0 %v115
    %168 = vmatprep.subr.mxu0 %v118
    %169 = vmatpush1.msra.mxu0 %v117
    %170 = vmatprep.subr.mxu0 0.0
    %171 = vmatpush1.msra.mxu0 0.0
    %172 = vmatprep.subr.mxu0 0.0
    %173 = vmatpush1.msra.mxu0 0.0
    %174 = vmatprep.subr.mxu0 0.0
    %175 = vmatpush1.msra.mxu0 0.0
    %176 = vmatprep.subr.mxu0 0.0
    %177 = vmatpush1.msra.mxu0 0.0
    %178 = vmatprep.subr.mxu0 0.0
    %179 = vmatpush1.msra.mxu0 0.0
    %180 = vmatprep.subr.mxu0 0.0
    %181 = vmatpush1.msra.mxu0 0.0
    %182 = vmatprep.subr.mxu0 0.0
    %183 = vmatpush1.msra.mxu0 0.0
    %184 = vmatprep.subr.mxu0 0.0
    %185 = vmatpush1.msra.mxu0 0.0
    %186 = vmatprep.subr.mxu0 0.0
    %187 = vmatpush1.msra.mxu0 0.0
    %188 = vmatprep.subr.mxu0 0.0
    %189 = vmatpush1.msra.mxu0 0.0
    %190 = vmatprep.subr.mxu0 0.0
    %191 = vmatpush1.msra.mxu0 0.0
    %192 = vmatprep.subr.mxu0 0.0
    %193 = vmatpush1.msra.mxu0 0.0
    %194 = vmatprep.subr.mxu0 0.0
    %195 = vmatpush1.msra.mxu0 0.0
    %196 = vmatprep.subr.mxu0 0.0
    %197 = vmatpush1.msra.mxu0 0.0
    %198 = vmatprep.subr.mxu0 0.0
    %199 = vmatpush1.msra.mxu0 0.0
    %200 = vmatprep.subr.mxu0 0.0
    %201 = vmatpush1.msra.mxu0 0.0
    %202 = vmatprep.mubr.f32.mxu0 0.0
    %203 = vmatmul.mubr.f32.gmra.mrb[0].mxu0 %v86
    %v204 = vpop.f32.mrb[0].mxu0
    %v205 = vadd.f32 %v133, %v204
    %v206 = vpop.f32.mrb[0].mxu0
    %v207 = vadd.f32 %v137, %v206
    %208 = vdwg.mxu0
    %v209 = vld [vmem:[#allocation8] sm:$0xff]
    %v210 = vld [vmem:[#allocation8 + $0x8] sm:$0xff]
    %v211 = vld [vmem:[#allocation8 + $0x10] sm:$0xff]
    %v212 = vld [vmem:[#allocation8 + $0x18] sm:$0xff]
    %v213 = vld [vmem:[#allocation8 + $0x20] sm:$0xff]
    %v214 = vld [vmem:[#allocation8 + $0x28] sm:$0xff]
    %v215 = vld [vmem:[#allocation8 + $0x30] sm:$0xff]
    %v216 = vld [vmem:[#allocation8 + $0x38] sm:$0xff]
    %v217 = vld [vmem:[#allocation8 + $0x40] sm:$0xff]
    %v218 = vld [vmem:[#allocation8 + $0x48] sm:$0xff]
    %v219 = vld [vmem:[#allocation8 + $0x50] sm:$0xff]
    %v220 = vld [vmem:[#allocation8 + $0x58] sm:$0xff]
    %v221 = vld [vmem:[#allocation8 + $0x60] sm:$0xff]
    %v222 = vld [vmem:[#allocation8 + $0x68] sm:$0xff]
    %v223 = vld [vmem:[#allocation8 + $0x70] sm:$0xff]
    %v224 = vld [vmem:[#allocation8 + $0x78] sm:$0xff]
    %v225 = vld [vmem:[#allocation8 + $0x80] sm:$0xff]
    %v226 = vld [vmem:[#allocation8 + $0x88] sm:$0xff]
    %v227 = vld [vmem:[#allocation8 + $0x90] sm:$0xff]
    %v228 = vld [vmem:[#allocation8 + $0x98] sm:$0xff]
    %v229 = vld [vmem:[#allocation8 + $0xa0] sm:$0xff]
    %v230 = vld [vmem:[#allocation8 + $0xa8] sm:$0xff]
    %v231 = vld [vmem:[#allocation8 + $0xb0] sm:$0xff]
    %v232 = vld [vmem:[#allocation8 + $0xb8] sm:$0xff]
    %v233 = vld [vmem:[#allocation8 + $0xc0] sm:$0xff]
    %v234 = vld [vmem:[#allocation8 + $0xc8] sm:$0xff]
    %v235 = vld [vmem:[#allocation8 + $0xd0] sm:$0xff]
    %v236 = vld [vmem:[#allocation8 + $0xd8] sm:$0xff]
    %v237 = vld [vmem:[#allocation8 + $0xe0] sm:$0xff]
    %v238 = vld [vmem:[#allocation8 + $0xe8] sm:$0xff]
    %v239 = vld [vmem:[#allocation8 + $0xf0] sm:$0xff]
    %v240 = vld [vmem:[#allocation8 + $0xf8] sm:$0xff]
    %v241 = vld [vmem:[#allocation8 + $0x100] sm:$0xff]
    %v242 = vld [vmem:[#allocation8 + $0x108] sm:$0xff]
    %v243 = vld [vmem:[#allocation8 + $0x110] sm:$0xff]
    %v244 = vld [vmem:[#allocation8 + $0x118] sm:$0xff]
    %v245 = vld [vmem:[#allocation8 + $0x120] sm:$0xff]
    %v246 = vld [vmem:[#allocation8 + $0x128] sm:$0xff]
    %v247 = vld [vmem:[#allocation8 + $0x130] sm:$0xff]
    %v248 = vld [vmem:[#allocation8 + $0x138] sm:$0xff]
    %v249 = vld [vmem:[#allocation8 + $0x140] sm:$0xff]
    %v250 = vld [vmem:[#allocation8 + $0x148] sm:$0xff]
    %v251 = vld [vmem:[#allocation8 + $0x150] sm:$0xff]
    %v252 = vld [vmem:[#allocation8 + $0x158] sm:$0xff]
    %v253 = vld [vmem:[#allocation8 + $0x160] sm:$0xff]
    %v254 = vld [vmem:[#allocation8 + $0x168] sm:$0xff]
    %v255 = vld [vmem:[#allocation8 + $0x170] sm:$0xff]
    %v256 = vld [vmem:[#allocation8 + $0x178] sm:$0xff]
    %v257 = vld [vmem:[#allocation8 + $0x180] sm:$0xff]
    %v258 = vld [vmem:[#allocation8 + $0x188] sm:$0xff]
    %v259 = vld [vmem:[#allocation8 + $0x190] sm:$0xff]
    %v260 = vld [vmem:[#allocation8 + $0x198] sm:$0xff]
    %v261 = vld [vmem:[#allocation8 + $0x1a0] sm:$0xff]
    %v262 = vld [vmem:[#allocation8 + $0x1a8] sm:$0xff]
    %v263 = vld [vmem:[#allocation8 + $0x1b0] sm:$0xff]
    %v264 = vld [vmem:[#allocation8 + $0x1b8] sm:$0xff]
    %v265 = vld [vmem:[#allocation8 + $0x1c0] sm:$0xff]
    %v266 = vld [vmem:[#allocation8 + $0x1c8] sm:$0xff]
    %v267 = vld [vmem:[#allocation8 + $0x1d0] sm:$0xff]
    %v268 = vld [vmem:[#allocation8 + $0x1d8] sm:$0xff]
    %v269 = vld [vmem:[#allocation8 + $0x1e0] sm:$0xff]
    %v270 = vld [vmem:[#allocation8 + $0x1e8] sm:$0xff]
    %v271 = vld [vmem:[#allocation8 + $0x1f0] sm:$0xff]
    %v272 = vld [vmem:[#allocation8 + $0x1f8] sm:$0xff]
    %273 = vmatprep.subr.mxu0 %v210
    %274 = vmatpush1.msra.mxu0 %v209
    %275 = vmatprep.subr.mxu0 %v212
    %276 = vmatpush1.msra.mxu0 %v211
    %277 = vmatprep.subr.mxu0 %v214
    %278 = vmatpush1.msra.mxu0 %v213
    %279 = vmatprep.subr.mxu0 %v216
    %280 = vmatpush1.msra.mxu0 %v215
    %281 = vmatprep.subr.mxu0 %v218
    %282 = vmatpush1.msra.mxu0 %v217
    %283 = vmatprep.subr.mxu0 %v220
    %284 = vmatpush1.msra.mxu0 %v219
    %285 = vmatprep.subr.mxu0 %v222
    %286 = vmatpush1.msra.mxu0 %v221
    %287 = vmatprep.subr.mxu0 %v224
    %288 = vmatpush1.msra.mxu0 %v223
    %289 = vmatprep.subr.mxu0 %v226
    %290 = vmatpush1.msra.mxu0 %v225
    %291 = vmatprep.subr.mxu0 %v228
    %292 = vmatpush1.msra.mxu0 %v227
    %293 = vmatprep.subr.mxu0 %v230
    %294 = vmatpush1.msra.mxu0 %v229
    %295 = vmatprep.subr.mxu0 %v232
    %296 = vmatpush1.msra.mxu0 %v231
    %297 = vmatprep.subr.mxu0 %v234
    %298 = vmatpush1.msra.mxu0 %v233
    %299 = vmatprep.subr.mxu0 %v236
    %300 = vmatpush1.msra.mxu0 %v235
    %301 = vmatprep.subr.mxu0 %v238
    %302 = vmatpush1.msra.mxu0 %v237
    %303 = vmatprep.subr.mxu0 %v240
    %304 = vmatpush1.msra.mxu0 %v239
    %305 = vmatprep.subr.mxu0 %v242
    %306 = vmatpush1.msra.mxu0 %v241
    %307 = vmatprep.subr.mxu0 %v244
    %308 = vmatpush1.msra.mxu0 %v243
    %309 = vmatprep.subr.mxu0 %v246
    %310 = vmatpush1.msra.mxu0 %v245
    %311 = vmatprep.subr.mxu0 %v248
    %312 = vmatpush1.msra.mxu0 %v247
    %313 = vmatprep.subr.mxu0 %v250
    %314 = vmatpush1.msra.mxu0 %v249
    %315 = vmatprep.subr.mxu0 %v252
    %316 = vmatpush1.msra.mxu0 %v251
    %317 = vmatprep.subr.mxu0 %v254
    %318 = vmatpush1.msra.mxu0 %v253
    %319 = vmatprep.subr.mxu0 %v256
    %320 = vmatpush1.msra.mxu0 %v255
    %321 = vmatprep.subr.mxu0 %v258
    %322 = vmatpush1.msra.mxu0 %v257
    %323 = vmatprep.subr.mxu0 %v260
    %324 = vmatpush1.msra.mxu0 %v259
    %325 = vmatprep.subr.mxu0 %v262
    %326 = vmatpush1.msra.mxu0 %v261
    %327 = vmatprep.subr.mxu0 %v264
    %328 = vmatpush1.msra.mxu0 %v263
    %329 = vmatprep.subr.mxu0 %v266
    %330 = vmatpush1.msra.mxu0 %v265
    %331 = vmatprep.subr.mxu0 %v268
    %332 = vmatpush1.msra.mxu0 %v267
    %333 = vmatprep.subr.mxu0 %v270
    %334 = vmatpush1.msra.mxu0 %v269
    %335 = vmatprep.subr.mxu0 %v272
    %336 = vmatpush1.msra.mxu0 %v271
    %337 = vmatprep.mubr.f32.mxu0 %v207
    %338 = vmatmul.mubr.f32.gmra.mrb[0].mxu0 %v205
    %v339 = vpop.f32.mrb[0].mxu0
    %v340 = vadd.f32 0.0, %v339
    %v341 = vpop.f32.mrb[0].mxu0
    %v342 = vadd.f32 0.0, %v341
    %343 = vdwg.mxu0
    %v344 = vsub.f32 %v205, %v340
    %v345 = vsub.f32 %v207, %v342
    %v346 = vmul.f32 %v344, %v344
    %v347 = vmul.f32 %v345, %v345
    %348 = vmatprep.subr.mxu0 %v210
    %349 = vmatpush1.msra.mxu0 %v209
    %350 = vmatprep.subr.mxu0 %v212
    %351 = vmatpush1.msra.mxu0 %v211
    %352 = vmatprep.subr.mxu0 %v214
    %353 = vmatpush1.msra.mxu0 %v213
    %354 = vmatprep.subr.mxu0 %v216
    %355 = vmatpush1.msra.mxu0 %v215
    %356 = vmatprep.subr.mxu0 %v218
    %357 = vmatpush1.msra.mxu0 %v217
    %358 = vmatprep.subr.mxu0 %v220
    %359 = vmatpush1.msra.mxu0 %v219
    %360 = vmatprep.subr.mxu0 %v222
    %361 = vmatpush1.msra.mxu0 %v221
    %362 = vmatprep.subr.mxu0 %v224
    %363 = vmatpush1.msra.mxu0 %v223
    %364 = vmatprep.subr.mxu0 %v226
    %365 = vmatpush1.msra.mxu0 %v225
    %366 = vmatprep.subr.mxu0 %v228
    %367 = vmatpush1.msra.mxu0 %v227
    %368 = vmatprep.subr.mxu0 %v230
    %369 = vmatpush1.msra.mxu0 %v229
    %370 = vmatprep.subr.mxu0 %v232
    %371 = vmatpush1.msra.mxu0 %v231
    %372 = vmatprep.subr.mxu0 %v234
    %373 = vmatpush1.msra.mxu0 %v233
    %374 = vmatprep.subr.mxu0 %v236
    %375 = vmatpush1.msra.mxu0 %v235
    %376 = vmatprep.subr.mxu0 %v238
    %377 = vmatpush1.msra.mxu0 %v237
    %378 = vmatprep.subr.mxu0 %v240
    %379 = vmatpush1.msra.mxu0 %v239
    %380 = vmatprep.subr.mxu0 %v242
    %381 = vmatpush1.msra.mxu0 %v241
    %382 = vmatprep.subr.mxu0 %v244
    %383 = vmatpush1.msra.mxu0 %v243
    %384 = vmatprep.subr.mxu0 %v246
    %385 = vmatpush1.msra.mxu0 %v245
    %386 = vmatprep.subr.mxu0 %v248
    %387 = vmatpush1.msra.mxu0 %v247
    %388 = vmatprep.subr.mxu0 %v250
    %389 = vmatpush1.msra.mxu0 %v249
    %390 = vmatprep.subr.mxu0 %v252
    %391 = vmatpush1.msra.mxu0 %v251
    %392 = vmatprep.subr.mxu0 %v254
    %393 = vmatpush1.msra.mxu0 %v253
    %394 = vmatprep.subr.mxu0 %v256
    %395 = vmatpush1.msra.mxu0 %v255
    %396 = vmatprep.subr.mxu0 %v258
    %397 = vmatpush1.msra.mxu0 %v257
    %398 = vmatprep.subr.mxu0 %v260
    %399 = vmatpush1.msra.mxu0 %v259
    %400 = vmatprep.subr.mxu0 %v262
    %401 = vmatpush1.msra.mxu0 %v261
    %402 = vmatprep.subr.mxu0 %v264
    %403 = vmatpush1.msra.mxu0 %v263
    %404 = vmatprep.subr.mxu0 %v266
    %405 = vmatpush1.msra.mxu0 %v265
    %406 = vmatprep.subr.mxu0 %v268
    %407 = vmatpush1.msra.mxu0 %v267
    %408 = vmatprep.subr.mxu0 %v270
    %409 = vmatpush1.msra.mxu0 %v269
    %410 = vmatprep.subr.mxu0 %v272
    %411 = vmatpush1.msra.mxu0 %v271
    %412 = vmatprep.mubr.f32.mxu0 %v347
    %413 = vmatmul.mubr.f32.gmra.mrb[0].mxu0 %v346
    %v414 = vpop.f32.mrb[0].mxu0
    %v415 = vadd.f32 1e-05, %v414
    %v416 = vpop.f32.mrb[0].mxu0
    %v417 = vadd.f32 1e-05, %v416
    %418 = vdwg.mxu0
    %v419 = vrsqrt.pop %v415
    %v420 = vrsqrt.pop %v417
    %v421 = vmul.f32 %v344, %v419
    %v422 = vmul.f32 %v345, %v420
    %v423 = vlaneseq
    %v424 = vshrl.u32 %v423, 7
    %v425 = vsub.s32 1, %v424
    %v426 = vrot.slane %v85, %v425
    %v427 = vlaneseq
    %v428 = vshrl.u32 %v427, 7
    %v429 = vsub.s32 5, %v428
    %v430 = vrot.slane %v85, %v429
    %v433 = vlaneseq
    %v434 = vshrl.u32 %v433, 7
    %v435 = vsub.s32 1, %v434
    %v436 = vrot.slane %v426, %v435
    %v437 = vlaneseq
    %v438 = vshrl.u32 %v437, 7
    %v439 = vsub.s32 1, %v438
    %v440 = vrot.slane %v430, %v439
    %v441 = vmul.f32 %v421, %v436
    %v442 = vmul.f32 %v422, %v440
    %v443 = vlaneseq
    %v444 = vshrl.u32 %v443, 7
    %v445 = vsub.s32 2, %v444
    %v446 = vrot.slane %v85, %v445
    %v447 = vlaneseq
    %v448 = vshrl.u32 %v447, 7
    %v449 = vsub.s32 6, %v448
    %v450 = vrot.slane %v85, %v449
    %v453 = vlaneseq
    %v454 = vshrl.u32 %v453, 7
    %v455 = vsub.s32 2, %v454
    %v456 = vrot.slane %v446, %v455
    %v457 = vlaneseq
    %v458 = vshrl.u32 %v457, 7
    %v459 = vsub.s32 2, %v458
    %v460 = vrot.slane %v450, %v459
    %v461 = vadd.f32 %v441, %v456
    %v462 = vadd.f32 %v442, %v460
    %v463 = vmax.f32 %v461, 0.0
    %v464 = vmax.f32 %v462, 0.0
    %v465 = vld [vmem:[#allocation10] sm:$0xff]
    %v466 = vld [vmem:[#allocation10 + $0x8] sm:$0xff]
    %v467 = vld [vmem:[#allocation10 + $0x10] sm:$0xff]
    %v468 = vld [vmem:[#allocation10 + $0x18] sm:$0xff]
    %v469 = vld [vmem:[#allocation10 + $0x20] sm:$0xff]
    %v470 = vld [vmem:[#allocation10 + $0x28] sm:$0xff]
    %v471 = vld [vmem:[#allocation10 + $0x30] sm:$0xff]
    %v472 = vld [vmem:[#allocation10 + $0x38] sm:$0xff]
    %v473 = vld [vmem:[#allocation10 + $0x40] sm:$0xff]
    %v474 = vld [vmem:[#allocation10 + $0x48] sm:$0xff]
    %v475 = vld [vmem:[#allocation10 + $0x50] sm:$0xff]
    %v476 = vld [vmem:[#allocation10 + $0x58] sm:$0xff]
    %v477 = vld [vmem:[#allocation10 + $0x60] sm:$0xff]
    %v478 = vld [vmem:[#allocation10 + $0x68] sm:$0xff]
    %v479 = vld [vmem:[#allocation10 + $0x70] sm:$0xff]
    %v480 = vld [vmem:[#allocation10 + $0x78] sm:$0xff]
    %v481 = vld [vmem:[#allocation10 + $0x80] sm:$0xff]
    %v482 = vld [vmem:[#allocation10 + $0x88] sm:$0xff]
    %v483 = vld [vmem:[#allocation10 + $0x90] sm:$0xff]
    %v484 = vld [vmem:[#allocation10 + $0x98] sm:$0xff]
    %v485 = vld [vmem:[#allocation10 + $0xa0] sm:$0xff]
    %v486 = vld [vmem:[#allocation10 + $0xa8] sm:$0xff]
    %v487 = vld [vmem:[#allocation10 + $0xb0] sm:$0xff]
    %v488 = vld [vmem:[#allocation10 + $0xb8] sm:$0xff]
    %v489 = vld [vmem:[#allocation10 + $0xc0] sm:$0xff]
    %v490 = vld [vmem:[#allocation10 + $0xc8] sm:$0xff]
    %v491 = vld [vmem:[#allocation10 + $0xd0] sm:$0xff]
    %v492 = vld [vmem:[#allocation10 + $0xd8] sm:$0xff]
    %v493 = vld [vmem:[#allocation10 + $0xe0] sm:$0xff]
    %v494 = vld [vmem:[#allocation10 + $0xe8] sm:$0xff]
    %v495 = vld [vmem:[#allocation10 + $0xf0] sm:$0xff]
    %v496 = vld [vmem:[#allocation10 + $0xf8] sm:$0xff]
    %v497 = vlaneseq
    %v498 = vshrl.u32 %v497, 7
    %v499 = vsub.s32 3, %v498
    %v500 = vrot.slane %v85, %v499
    %501 = vmatprep.subr.mxu0 0.0
    %502 = vmatpush1.msra.mxu0 %v465
    %503 = vmatprep.subr.mxu0 0.0
    %504 = vmatpush1.msra.mxu0 %v466
    %505 = vmatprep.subr.mxu0 0.0
    %506 = vmatpush1.msra.mxu0 %v467
    %507 = vmatprep.subr.mxu0 0.0
    %508 = vmatpush1.msra.mxu0 %v468
    %509 = vmatprep.subr.mxu0 0.0
    %510 = vmatpush1.msra.mxu0 %v469
    %511 = vmatprep.subr.mxu0 0.0
    %512 = vmatpush1.msra.mxu0 %v470
    %513 = vmatprep.subr.mxu0 0.0
    %514 = vmatpush1.msra.mxu0 %v471
    %515 = vmatprep.subr.mxu0 0.0
    %516 = vmatpush1.msra.mxu0 %v472
    %517 = vmatprep.subr.mxu0 0.0
    %518 = vmatpush1.msra.mxu0 %v473
    %519 = vmatprep.subr.mxu0 0.0
    %520 = vmatpush1.msra.mxu0 %v474
    %521 = vmatprep.subr.mxu0 0.0
    %522 = vmatpush1.msra.mxu0 %v475
    %523 = vmatprep.subr.mxu0 0.0
    %524 = vmatpush1.msra.mxu0 %v476
    %525 = vmatprep.subr.mxu0 0.0
    %526 = vmatpush1.msra.mxu0 %v477
    %527 = vmatprep.subr.mxu0 0.0
    %528 = vmatpush1.msra.mxu0 %v478
    %529 = vmatprep.subr.mxu0 0.0
    %530 = vmatpush1.msra.mxu0 %v479
    %531 = vmatprep.subr.mxu0 0.0
    %532 = vmatpush1.msra.mxu0 %v480
    %533 = vmatprep.subr.mxu0 0.0
    %534 = vmatpush1.msra.mxu0 %v481
    %535 = vmatprep.subr.mxu0 0.0
    %536 = vmatpush1.msra.mxu0 %v482
    %537 = vmatprep.subr.mxu0 0.0
    %538 = vmatpush1.msra.mxu0 %v483
    %539 = vmatprep.subr.mxu0 0.0
    %540 = vmatpush1.msra.mxu0 %v484
    %541 = vmatprep.subr.mxu0 0.0
    %542 = vmatpush1.msra.mxu0 %v485
    %543 = vmatprep.subr.mxu0 0.0
    %544 = vmatpush1.msra.mxu0 %v486
    %545 = vmatprep.subr.mxu0 0.0
    %546 = vmatpush1.msra.mxu0 %v487
    %547 = vmatprep.subr.mxu0 0.0
    %548 = vmatpush1.msra.mxu0 %v488
    %549 = vmatprep.subr.mxu0 0.0
    %550 = vmatpush1.msra.mxu0 %v489
    %551 = vmatprep.subr.mxu0 0.0
    %552 = vmatpush1.msra.mxu0 %v490
    %553 = vmatprep.subr.mxu0 0.0
    %554 = vmatpush1.msra.mxu0 %v491
    %555 = vmatprep.subr.mxu0 0.0
    %556 = vmatpush1.msra.mxu0 %v492
    %557 = vmatprep.subr.mxu0 0.0
    %558 = vmatpush1.msra.mxu0 %v493
    %559 = vmatprep.subr.mxu0 0.0
    %560 = vmatpush1.msra.mxu0 %v494
    %561 = vmatprep.subr.mxu0 0.0
    %562 = vmatpush1.msra.mxu0 %v495
    %563 = vmatprep.subr.mxu0 0.0
    %564 = vmatpush1.msra.mxu0 %v496
    %565 = vmatprep.mubr.f32.mxu0 %v464
    %566 = vmatmul.mubr.f32.gmra.mrb[0].mxu0 %v463
    %v567 = vpop.f32.mrb[0].mxu0
    %v568 = vadd.f32 %v500, %v567
    %v569 = vpop.f32.mrb[0].mxu0
    %570 = vdwg.mxu0
    %571 = vst [vmem:[#allocation11] sm:$0xff] %v568
    // Predicated region
    $region42: #{tpu_custom_call.1} parent=1 // pred_check
      _
    $region43: #{tpu_custom_call.1} parent=1 // pred_check_branch
      %573 = sbr.rel (0) target = $region45
    $region44: #{tpu_custom_call.1} parent=1 // pred_region
      %s575 = ssub.s32 128, 128
      %576 = vsyncadd [#allocation4], %s575
      %s578 = sshll.u32 [#allocation11], 4
      %s579 = int_to_ptr.vmem [resolvable:$true] %s578
      %581 = dma.vmem_to_hbm [thread:$0]  %s579, 128, %s5, [#allocation4]
    $region45: #{tpu_custom_call.1} parent=1 // pred_fallthru
      _
    // Predicated region
    $region46: #{tpu_custom_call.1} parent=1 // pred_check
      _
    $region47: #{tpu_custom_call.1} parent=1 // pred_check_branch
      %583 = sbr.rel (0) target = $region49
    $region48: #{tpu_custom_call.1} parent=1 // pred_region
      %584 = dma.done [#allocation4], 128
    $region49: #{tpu_custom_call.1} parent=1 // pred_fallthru
      _
    %585 = vsyncpa [#allocation3], 1
    %586 = vsyncpa [#allocation6], 1
    %587 = vsyncpa [#allocation9], 1
    %588 = vsyncpa [#allocation4], 1

</llo_original>
